<compile_context>
chip_gen: v5e
topology: v5e:2x2
jax: 0.10.0
libtpu: 0.0.40
codegen_flags: <defaults>
</compile_context>

<pallas_src>
import functools

import jax
import jax.numpy as jnp
from jax.experimental import pallas as pl
from jax.experimental.pallas import tpu as pltpu


def _cdiv(a, b):
    return -(-a // b)


def _round_up(a, b):
    return _cdiv(a, b) * b


def _focal_loss_kernel(logits_ref, labels_ref, out_ref, acc_ref, *,
                       gamma: float, ignore_index: int):
    """One (tile_n, C) row tile -> accumulate sum of focal terms for this partial."""
    j = pl.program_id(1)  # reduction axis: row tiles within this partial sum

    @pl.when(j == 0)
    def _():
        acc_ref[...] = jnp.zeros_like(acc_ref)

    logits = logits_ref[...].astype(jnp.float32)     # (tile_n, C)
    labels = labels_ref[...]                         # (tile_n, 1) int32

    # Numerically-stable logsumexp per row.
    row_max = jnp.max(logits, axis=-1, keepdims=True)
    shifted = logits - row_max
    lse = jnp.log(jnp.sum(jnp.exp(shifted), axis=-1, keepdims=True)) + row_max

    # Target-logit gather via compare+select (single vselect, no float one-hot mul).
    # NOTE: labels outside [0, C) that are not ignore_index gather 0 (torch's CE
    # would error on such labels; they are assumed absent).
    col = jax.lax.broadcasted_iota(jnp.int32, logits.shape, 1)
    target_logit = jnp.sum(jnp.where(col == labels, logits, 0.0),
                           axis=-1, keepdims=True)   # (tile_n, 1)

    valid = labels != ignore_index                   # (tile_n, 1) bool
    # Clamp: rounding can make lse - target slightly negative when the target
    # logit is the row max, which would NaN the pow path below.
    ce = jnp.where(valid, jnp.maximum(lse - target_logit, 0.0), 0.0)

    pt = jnp.exp(-ce)
    m = 1.0 - pt                                     # >= 0 because ce >= 0
    g = float(gamma)
    if g == 2.0:                                     # common case: two VPU muls
        mod = m * m
    elif g == 1.0:
        mod = m
    elif g == 0.0:
        mod = jnp.ones_like(m)
    else:                                            # general (non-integer) gamma
        mod = jax.lax.pow(jnp.maximum(m, 0.0), jnp.float32(g))
    focal = jnp.where(valid, mod * ce, 0.0)

    # Scalar tile-sum broadcast into a full (8,128) vreg accumulator.
    acc_ref[...] += jnp.sum(focal)

    @pl.when(j == pl.num_programs(1) - 1)
    def _():
        out_ref[...] = acc_ref[...].reshape(out_ref.shape)


def focal_loss(logits, labels, *, gamma=2.0, ignore_index=-100,
               tile_n=None, num_partials=2, vmem_budget_bytes=8 * 1024 * 1024):
    """Pallas implementation of FocalLoss.forward.

    logits: (B, T, C) or (N, C) float array
    labels: (B, T) or (N,) integer array (ignore_index marks padded tokens)
    Returns a scalar float32 loss.
    """
    if logits.ndim == 3:
        logits = logits.reshape(-1, logits.shape[-1])
        labels = labels.reshape(-1)

    N, C = logits.shape
    itemsize = jnp.dtype(logits.dtype).itemsize
    # Sublane packing: 8 rows/vreg for 32-bit, 16 for bf16, 32 for int8.
    row_mult = max(8, 32 // max(itemsize, 1))

    if tile_n is None:
        # Two double-buffered logits blocks must fit the VMEM budget.
        t = vmem_budget_bytes // (2 * C * itemsize)
        t = min(t, 1024)                      # diminishing returns past ~1K rows/step
        t = min(t, _round_up(N, row_mult))    # don't pad tiny problems to 1K rows
        tile_n = max(row_mult, (t // row_mult) * row_mult)
    tile_n = int(tile_n)
    # TODO(synk): for vocab-scale C add a class-tile grid axis with online logsumexp;
    # TODO(synk): for tiny C (<< 128) pack several rows into the lane axis to fill vregs.

    num_tiles = _cdiv(N, tile_n)
    # Partial sums along a 'parallel' outer axis so v7x's 2 TensorCores split the
    # work; on 1-TC chips (v5e/v6e) the outer axis simply runs sequentially.
    P = max(1, min(int(num_partials), num_tiles))
    tiles_per_p = _cdiv(num_tiles, P)
    n_pad = P * tiles_per_p * tile_n

    if n_pad != N:
        logits = jnp.pad(logits, ((0, n_pad - N), (0, 0)))
        labels = jnp.pad(labels, (0, n_pad - N), constant_values=ignore_index)
    labels2d = labels.reshape(n_pad, 1).astype(jnp.int32)

    kernel = functools.partial(
        _focal_loss_kernel, gamma=float(gamma), ignore_index=int(ignore_index))

    partials = pl.pallas_call(
        kernel,
        out_shape=jax.ShapeDtypeStruct((P, 8, 128), jnp.float32),
        grid_spec=pltpu.PrefetchScalarGridSpec(
            num_scalar_prefetch=0,
            grid=(P, tiles_per_p),
            in_specs=[
                pl.BlockSpec((tile_n, C), lambda p, j: (p * tiles_per_p + j, 0)),
                pl.BlockSpec((tile_n, 1), lambda p, j: (p * tiles_per_p + j, 0)),
            ],
            out_specs=pl.BlockSpec((1, 8, 128), lambda p, j: (p, 0, 0)),
            scratch_shapes=[pltpu.VMEM((8, 128), jnp.float32)],
        ),
        compiler_params=pltpu.CompilerParams(
            dimension_semantics=("parallel", "arbitrary"),
            vmem_limit_bytes=32 * 1024 * 1024),
    )(logits, labels2d)

    total = jnp.sum(partials[:, 0, 0])
    return total / jnp.float32(N)


def _focal_loss_ref(logits, labels, gamma=2.0, ignore_index=-100):
    """Pure-JAX reference mirroring torch semantics."""
    if logits.ndim == 3:
        logits = logits.reshape(-1, logits.shape[-1])
        labels = labels.reshape(-1)
    logits = logits.astype(jnp.float32)
    lse = jax.nn.logsumexp(logits, axis=-1)
    tgt = jnp.take_along_axis(
        logits, jnp.clip(labels, 0, logits.shape[-1] - 1)[:, None], axis=-1)[:, 0]
    valid = labels != ignore_index
    ce = jnp.where(valid, lse - tgt, 0.0)
    pt = jnp.exp(-ce)
    focal = (1.0 - pt) ** gamma * ce
    return jnp.mean(focal)


if __name__ == "__main__":
    key = jax.random.PRNGKey(0)

    # Case 1: the module's natural (B, T, C) shape with some padded tokens.
    B, T, C = 2, 8, 16
    k1, k2, k3, key = jax.random.split(key, 4)
    logits1 = jax.random.normal(k1, (B, T, C), dtype=jnp.float32)
    labels1 = jax.random.randint(k2, (B, T), 0, C, dtype=jnp.int32)
    labels1 = jnp.where(jax.random.bernoulli(k3, p=0.25, shape=(B, T)), -100, labels1)
    out1 = jax.block_until_ready(focal_loss(logits1, labels1))
    ref1 = _focal_loss_ref(logits1, labels1)
    assert jnp.allclose(out1, ref1, atol=1e-5, rtol=1e-4), (out1, ref1)

    # Case 2: flat (N, C) with N not a multiple of the tile (exercises padding/mask).
    N2, C2 = 37, 24
    k1, k2, k3, key = jax.random.split(key, 4)
    logits2 = jax.random.normal(k1, (N2, C2), dtype=jnp.float32)
    labels2 = jax.random.randint(k2, (N2,), 0, C2, dtype=jnp.int32)
    labels2 = jnp.where(jax.random.bernoulli(k3, p=0.2, shape=(N2,)), -100, labels2)
    out2 = jax.block_until_ready(focal_loss(logits2, labels2))
    ref2 = _focal_loss_ref(logits2, labels2)
    assert jnp.allclose(out2, ref2, atol=1e-5, rtol=1e-4), (out2, ref2)

    # Case 2b: non-integer gamma (pow path).
    out2b = jax.block_until_ready(focal_loss(logits2, labels2, gamma=1.5))
    ref2b = _focal_loss_ref(logits2, labels2, gamma=1.5)
    assert jnp.allclose(out2b, ref2b, atol=1e-5, rtol=1e-4), (out2b, ref2b)

    # Case 3: larger N -> multiple row tiles and both parallel partial sums.
    N3, C3 = 3000, 16
    k1, k2, k3, key = jax.random.split(key, 4)
    logits3 = jax.random.normal(k1, (N3, C3), dtype=jnp.float32)
    labels3 = jax.random.randint(k2, (N3,), 0, C3, dtype=jnp.int32)
    labels3 = jnp.where(jax.random.bernoulli(k3, p=0.3, shape=(N3,)), -100, labels3)
    out3 = jax.block_until_ready(focal_loss(logits3, labels3))
    ref3 = _focal_loss_ref(logits3, labels3)
    assert jnp.allclose(out3, ref3, atol=1e-5, rtol=1e-4), (out3, ref3)

    print("KERNEL_OK")
</pallas_src>

<mosaic_0001>
module attributes {stable_mosaic.version = 11 : i64} {
  func.func @_focal_loss_kernel(%arg0: i32, %arg1: i32, %arg2: memref<16x16xf32, #tpu.memory_space<vmem>>, %arg3: memref<16x1xi32, #tpu.memory_space<vmem>>, %arg4: memref<1x8x128xf32, #tpu.memory_space<vmem>>, %arg5: memref<8x128xf32, #tpu.memory_space<vmem>>) attributes {dimension_semantics = [#tpu.dimension_semantics<parallel>, #tpu.dimension_semantics<arbitrary>], iteration_bounds = array<i64: 1, 1>, scalar_prefetch = 0 : i64, scratch_operands = 1 : i64, tpu.core_type = #tpu.core_type<tc>, window_params = [{transform_indices = @transform_0, window_bounds = array<i64: 16, 16>}, {transform_indices = @transform_1, window_bounds = array<i64: 16, 1>}, {transform_indices = @transform_2, window_bounds = array<i64: 1, 8, 128>}]} {
    %c0_i32 = arith.constant 0 : i32
    %0 = arith.cmpi eq, %arg1, %c0_i32 : i32
    %1 = arith.extui %0 : i1 to i32
    %c0_i32_0 = arith.constant 0 : i32
    %2 = arith.cmpi ne, %1, %c0_i32_0 : i32
    scf.if %2 {
      %cst_19 = arith.constant 0.000000e+00 : f32
      %48 = vector.broadcast %cst_19 : f32 to vector<8x128xf32>
      %c0_20 = arith.constant 0 : index
      %c0_21 = arith.constant 0 : index
      %49 = vector.load %arg5[%c0_20, %c0_21] : memref<8x128xf32, #tpu.memory_space<vmem>>, vector<8x128xf32>
      tpu.vector_store %arg5[%c0_20, %c0_21], %48 {strides = array<i32>} : memref<8x128xf32, #tpu.memory_space<vmem>>, vector<8x128xf32>,
    } else {
    }
    %c0 = arith.constant 0 : index
    %c0_1 = arith.constant 0 : index
    %3 = vector.load %arg2[%c0, %c0_1] : memref<16x16xf32, #tpu.memory_space<vmem>>, vector<16x16xf32>
    %c0_2 = arith.constant 0 : index
    %c0_3 = arith.constant 0 : index
    %4 = vector.load %arg3[%c0_2, %c0_3] : memref<16x1xi32, #tpu.memory_space<vmem>>, vector<16x1xi32>
    %cst = arith.constant dense<0xFF800000> : vector<16xf32>
    %5 = vector.multi_reduction <maximumf>, %3, %cst [1] : vector<16x16xf32> to vector<16xf32>
    %6 = vector.shape_cast %5 : vector<16xf32> to vector<16x1xf32>
    %7 = vector.broadcast %6 : vector<16x1xf32> to vector<16x16xf32>
    %8 = arith.subf %3, %7 : vector<16x16xf32>
    %9 = math.exp %8 : vector<16x16xf32>
    %cst_4 = arith.constant dense<0.000000e+00> : vector<16xf32>
    %10 = vector.multi_reduction <add>, %9, %cst_4 [1] : vector<16x16xf32> to vector<16xf32>
    %11 = vector.shape_cast %10 : vector<16xf32> to vector<16x1xf32>
    %12 = math.log %11 : vector<16x1xf32>
    %13 = arith.addf %12, %6 : vector<16x1xf32>
    %14 = tpu.iota {dimensions = array<i32: 1>} : vector<16x16xi32>
    %15 = vector.broadcast %4 : vector<16x1xi32> to vector<16x16xi32>
    %16 = arith.cmpi eq, %14, %15 : vector<16x16xi32>
    %cst_5 = arith.constant 0.000000e+00 : f32
    %17 = vector.broadcast %cst_5 : f32 to vector<16x16xf32>
    %18 = arith.select %16, %3, %17 : vector<16x16xi1>, vector<16x16xf32>
    %cst_6 = arith.constant dense<0.000000e+00> : vector<16xf32>
    %19 = vector.multi_reduction <add>, %18, %cst_6 [1] : vector<16x16xf32> to vector<16xf32>
    %20 = vector.shape_cast %19 : vector<16xf32> to vector<16x1xf32>
    %c-100_i32 = arith.constant -100 : i32
    %21 = vector.broadcast %c-100_i32 : i32 to vector<16x1xi32>
    %22 = arith.cmpi ne, %4, %21 : vector<16x1xi32>
    %23 = arith.subf %13, %20 : vector<16x1xf32>
    %cst_7 = arith.constant 0.000000e+00 : f32
    %24 = vector.broadcast %cst_7 : f32 to vector<16x1xf32>
    %25 = arith.maximumf %23, %24 : vector<16x1xf32>
    %cst_8 = arith.constant 0.000000e+00 : f32
    %26 = vector.broadcast %cst_8 : f32 to vector<16x1xf32>
    %27 = arith.select %22, %25, %26 : vector<16x1xi1>, vector<16x1xf32>
    %cst_9 = arith.constant 0.000000e+00 : f32
    %28 = vector.broadcast %cst_9 : f32 to vector<16x1xf32>
    %29 = arith.subf %28, %27 : vector<16x1xf32>
    %30 = math.exp %29 : vector<16x1xf32>
    %cst_10 = arith.constant 1.000000e+00 : f32
    %31 = vector.broadcast %cst_10 : f32 to vector<16x1xf32>
    %32 = arith.subf %31, %30 : vector<16x1xf32>
    %33 = arith.mulf %32, %32 : vector<16x1xf32>
    %34 = arith.mulf %33, %27 : vector<16x1xf32>
    %cst_11 = arith.constant 0.000000e+00 : f32
    %35 = vector.broadcast %cst_11 : f32 to vector<16x1xf32>
    %36 = arith.select %22, %34, %35 : vector<16x1xi1>, vector<16x1xf32>
    %c0_12 = arith.constant 0 : index
    %c0_13 = arith.constant 0 : index
    %37 = vector.load %arg5[%c0_12, %c0_13] : memref<8x128xf32, #tpu.memory_space<vmem>>, vector<8x128xf32>
    %38 = vector.shape_cast %36 : vector<16x1xf32> to vector<1x16x1xf32>
    %cst_14 = arith.constant dense<0.000000e+00> : vector<1xf32>
    %39 = vector.multi_reduction <add>, %38, %cst_14 [1, 2] : vector<1x16x1xf32> to vector<1xf32>
    %40 = vector.shape_cast %39 : vector<1xf32> to vector<1x1x1xf32>
    %41 = vector.extract %40[0, 0, 0] : f32 from vector<1x1x1xf32>
    %42 = vector.broadcast %41 : f32 to vector<8x128xf32>
    %43 = arith.addf %37, %42 : vector<8x128xf32>
    %c0_15 = arith.constant 0 : index
    %c0_16 = arith.constant 0 : index
    %44 = vector.load %arg5[%c0_15, %c0_16] : memref<8x128xf32, #tpu.memory_space<vmem>>, vector<8x128xf32>
    tpu.vector_store %arg5[%c0_15, %c0_16], %43 {strides = array<i32>} : memref<8x128xf32, #tpu.memory_space<vmem>>, vector<8x128xf32>,
    %c0_i32_17 = arith.constant 0 : i32
    %45 = arith.cmpi eq, %arg1, %c0_i32_17 : i32
    %46 = arith.extui %45 : i1 to i32
    %c0_i32_18 = arith.constant 0 : i32
    %47 = arith.cmpi ne, %46, %c0_i32_18 : i32
    scf.if %47 {
      %c0_19 = arith.constant 0 : index
      %c0_20 = arith.constant 0 : index
      %48 = vector.load %arg5[%c0_19, %c0_20] : memref<8x128xf32, #tpu.memory_space<vmem>>, vector<8x128xf32>
      %49 = vector.shape_cast %48 : vector<8x128xf32> to vector<1x8x128xf32>
      %c0_21 = arith.constant 0 : index
      %c0_22 = arith.constant 0 : index
      %c0_23 = arith.constant 0 : index
      %50 = vector.load %arg4[%c0_21, %c0_22, %c0_23] : memref<1x8x128xf32, #tpu.memory_space<vmem>>, vector<1x8x128xf32>
      tpu.vector_store %arg4[%c0_21, %c0_22, %c0_23], %49 {strides = array<i32>} : memref<1x8x128xf32, #tpu.memory_space<vmem>>, vector<1x8x128xf32>,
    } else {
    }
    return
  }
  func.func @transform_0(%arg0: i32, %arg1: i32) -> (i32, i32) {
    %c1_i32 = arith.constant 1 : i32
    %0 = arith.muli %arg0, %c1_i32 : i32
    %1 = arith.addi %0, %arg1 : i32
    %c0_i32 = arith.constant 0 : i32
    %c0_i32_0 = arith.constant 0 : i32
    return %1, %c0_i32 : i32, i32
  }
  func.func @transform_1(%arg0: i32, %arg1: i32) -> (i32, i32) {
    %c1_i32 = arith.constant 1 : i32
    %0 = arith.muli %arg0, %c1_i32 : i32
    %1 = arith.addi %0, %arg1 : i32
    %c0_i32 = arith.constant 0 : i32
    %c0_i32_0 = arith.constant 0 : i32
    return %1, %c0_i32 : i32, i32
  }
  func.func @transform_2(%arg0: i32, %arg1: i32) -> (i32, i32, i32) {
    %c0_i32 = arith.constant 0 : i32
    %c0_i32_0 = arith.constant 0 : i32
    %c0_i32_1 = arith.constant 0 : i32
    return %arg0, %c0_i32, %c0_i32_0 : i32, i32, i32
  }
}

</mosaic_0001>

<llo_original>
// kernel: tpu_custom_call.1
$region0: #{tpu_custom_call.1}
  #allocation0 [shape = 'u32[]', space=smem, size = 0x4, offset = 0x4, fixed_abs, tag = 'smem constant byte address 0x4 - core index']
  #allocation1 [shape = 'u32[72,128]{1,0:T(1,128)}', space=vmem, size = 0x9000, scoped, tag = 'internal scratch']
  #allocation2 [shape = 'f32[8,128]{1,0:T(8,128)}', space=vmem, size = 0x1000, scoped, tag = 'scratch operand']
  %s0 = inlined_call_operand.vmem [shape: f32[16,16], index: 0, kind: input, shape index: {}]
  %s1 = inlined_call_operand.vmem [shape: s32[16,1], index: 1, kind: input, shape index: {}]
  %s2 = inlined_call_operand.hbm [shape: f32[1,8,128], index: 2, kind: output, shape index: {}]
  %s3 = sld [smem:[#allocation0]]
  $region26: #{tpu_custom_call.1} parent=0
    _
  %s5 = ssub.s32 1, %s3
  %s6 = scalar_select 0, %s5, %s3
  $region1: #{tpu_custom_call.1} parent=0
    #allocation3 [shape = 'u8[4096]{0}', space=vmem, size = 0x1000, scoped, tag = 'output window, operand 0, single buffered']
    #allocation4 [shape = 's32[1]{0}', space=sflag, size = 0x4, scoped, tag = 'scoped memory for tpu_custom_call.1']
    %7 = vsyncpa [#allocation4], 0
    // Predicated region
    $region2: #{tpu_custom_call.1} parent=1 // pred_check
      _
    $region3: #{tpu_custom_call.1} parent=1 // pred_check_branch
      %9 = sbr.rel (0) target = $region5
    $region4: #{tpu_custom_call.1} parent=1 // pred_region
      %s10 = sadd.s32 0, 0
      %s11 = smul.u32 2, %s10
      %p12 = scmp.lt.s32.totalorder %s11, 1
      %s13 = scalar_select %p12, %s11, 1
      %s14 = smul.addr %s13, 8
      %s15 = scalar_lea.vmem %s0, %s14
      %s16 = sadd.s32 0, 0
      %s17 = smul.u32 2, %s16
    $region5: #{tpu_custom_call.1} parent=1 // pred_fallthru
      _
    // Predicated region
    $region6: #{tpu_custom_call.1} parent=1 // pred_check
      _
    $region7: #{tpu_custom_call.1} parent=1 // pred_check_branch
      %19 = sbr.rel (0) target = $region9
    $region8: #{tpu_custom_call.1} parent=1 // pred_region
      %s20 = sadd.s32 0, 0
      %s21 = smul.u32 2, %s20
      %p22 = scmp.lt.s32.totalorder %s21, 1
      %s23 = scalar_select %p22, %s21, 1
      %s24 = smul.addr %s23, 8
      %s25 = scalar_lea.vmem %s1, %s24
      %s26 = sadd.s32 0, 0
      %s27 = smul.u32 2, %s26
    $region9: #{tpu_custom_call.1} parent=1 // pred_fallthru
      _
    %s28 = sadd.s32 0, 0
    %s29 = smul.u32 2, %s28
    %p30 = scmp.lt.s32.totalorder %s29, 1
    %s31 = scalar_select %p30, %s29, 1
    %s32 = smul.addr %s31, 8
    %s33 = scalar_lea.vmem %s0, %s32
    %s34 = sadd.s32 0, 0
    %s35 = smul.u32 2, %s34
    %p36 = scmp.lt.s32.totalorder %s35, 1
    %s37 = scalar_select %p36, %s35, 1
    %s38 = smul.addr %s37, 8
    %s39 = scalar_lea.vmem %s1, %s38
    %s40 = sadd.s32 0, 0
    %s41 = smul.u32 2, %s40
    %p42 = scmp.lt.s32.totalorder %s41, 1
    %s43 = scalar_select %p42, %s41, 1
    %s44 = smul.addr %s43, 8
    %s45 = scalar_lea.vmem %s0, %s44
    %s46 = sadd.s32 0, 0
    %s47 = smul.u32 2, %s46
    %s48 = sadd.s32 0, 0
    %s49 = smul.u32 2, %s48
    %p50 = scmp.lt.s32.totalorder %s49, 1
    %s51 = scalar_select %p50, %s49, 1
    %s52 = smul.addr %s51, 8
    %s53 = scalar_lea.vmem %s1, %s52
    %s54 = sadd.s32 0, 0
    %s55 = smul.u32 2, %s54
    %p56 = scmp.eq.s32.totalorder 0, 0
    // Predicated region
    $region10: #{tpu_custom_call.1} parent=1 // pred_check
      %p57 = pneg %p56
    $region11: #{tpu_custom_call.1} parent=1 // pred_check_branch
      %59 = sbr.rel (%p57) target = $region13
    $region12: #{tpu_custom_call.1} parent=1 // pred_region
      %60 = vst [vmem:[#allocation2] sm:$0xff] 0.0
    $region13: #{tpu_custom_call.1} parent=1 // pred_fallthru
      _
    %v61 = vld [vmem:[%s45] sm:$0xff]
    %v62 = vld [vmem:[%s45 + $0x8] sm:$0xff]
    %v63 = vld [vmem:[%s53] sm:$0xff]
    %v64 = vld [vmem:[%s53 + $0x8] sm:$0xff]
    %vm65 = vcmask 130048
    %v66 = vsel %vm65, %v61, -inf
    %67 = vmax.xlane.f32.xlu0 %v66
    %v68 = vpop.xlane.xlu0 %67
    %v69 = vsel %vm65, %v62, -inf
    %70 = vmax.xlane.f32.xlu0 %v69
    %v71 = vpop.xlane.xlu0 %70
    %v72 = vsub.f32 %v61, %v68
    %v73 = vsub.f32 %v62, %v71
    %v74 = vmul.f32 %v72, 1.442695
    %v75 = vpow.pop %v74
    %v76 = vmul.f32 %v73, 1.442695
    %v77 = vpow.pop %v76
    %v78 = vsel %vm65, %v75, 0.0
    %79 = vadd.xlane.f32.xlu0 %v78
    %v80 = vpop.xlane.xlu0 %79
    %v81 = vsel %vm65, %v77, 0.0
    %82 = vadd.xlane.f32.xlu0 %v81
    %v83 = vpop.xlane.xlu0 %82
    %v84 = vlog2.pop %v80
    %v85 = vmul.f32 %v84, 0.6931472
    %v86 = vlog2.pop %v83
    %v87 = vmul.f32 %v86, 0.6931472
    %v88 = vadd.f32 %v85, %v68
    %v89 = vadd.f32 %v87, %v71
    %v90 = vlaneseq
    %v91 = vand.u32 %v90, 127
    %92 = vset.pattern.permute.xlu0 0
    %93 = vperm.xlu0 %92, %v63
    %v94 = vpop.permute.xlu0 %93
    %95 = vset.pattern.permute.xlu0 0
    %96 = vperm.xlu0 %95, %v64
    %v97 = vpop.permute.xlu0 %96
    %vm98 = vcmp.eq.s32.totalorder %v91, %v94
    %vm99 = vcmp.eq.s32.totalorder %v91, %v97
    %v100 = vsel %vm98, %v61, 0.0
    %v101 = vsel %vm99, %v62, 0.0
    %v102 = vsel %vm65, %v100, 0.0
    %103 = vadd.xlane.f32.xlu0 %v102
    %v104 = vpop.xlane.xlu0 %103
    %v105 = vsel %vm65, %v101, 0.0
    %106 = vadd.xlane.f32.xlu0 %v105
    %v107 = vpop.xlane.xlu0 %106
    %vm108 = vcmp.ne.s32.totalorder %v63, 4294967196
    %vm109 = vcmp.ne.s32.totalorder %v64, 4294967196
    %v110 = vsub.f32 %v88, %v104
    %v111 = vsub.f32 %v89, %v107
    %v112 = vmax.f32 %v110, 0.0
    %v113 = vmax.f32 %v111, 0.0
    %v114 = vsel %vm108, %v112, 0.0
    %v115 = vsel %vm109, %v113, 0.0
    %v116 = vsub.f32 0.0, %v114
    %v117 = vsub.f32 0.0, %v115
    %v118 = vmul.f32 %v116, 1.442695
    %v119 = vpow.pop %v118
    %v120 = vmul.f32 %v117, 1.442695
    %v121 = vpow.pop %v120
    %v122 = vsub.f32 1.0, %v119
    %v123 = vsub.f32 1.0, %v121
    %v124 = vmul.f32 %v122, %v122
    %v125 = vmul.f32 %v123, %v123
    %v126 = vmul.f32 %v124, %v114
    %v127 = vmul.f32 %v125, %v115
    %v128 = vsel %vm108, %v126, 0.0
    %v129 = vsel %vm109, %v127, 0.0
    %v130 = vld [vmem:[#allocation2] sm:$0xff]
    %vm131 = vcmask 7168
    %v132 = vsel %vm131, %v128, 0.0
    %v133 = vsel %vm131, %v129, 0.0
    %v134 = vadd.f32 %v132, %v133
    %135 = vadd.xlane.f32.xlu0 %v134
    %v136 = vpop.xlane.xlu0 %135
    %v137 = vrot.slane %v136, 4
    %v138 = vadd.f32 %v136, %v137
    %v139 = vrot.slane %v138, 2
    %v140 = vadd.f32 %v138, %v139
    %v141 = vrot.slane %v140, 1
    %v142 = vadd.f32 %v140, %v141
    %s143 = vtos %v142
    %v144 = vstv %s143
    %v145 = vadd.f32 %v130, %v144
    %146 = vst [vmem:[#allocation2] sm:$0xff] %v145
    // Predicated region
    $region14: #{tpu_custom_call.1} parent=1 // pred_check
      %p147 = pneg %p56
    $region15: #{tpu_custom_call.1} parent=1 // pred_check_branch
      %149 = sbr.rel (%p147) target = $region17
    $region16: #{tpu_custom_call.1} parent=1 // pred_region
      %v150 = vld [vmem:[#allocation2] sm:$0xff]
      %151 = vst [vmem:[#allocation3] sm:$0xff] %v150
    $region17: #{tpu_custom_call.1} parent=1 // pred_fallthru
      _
    // Predicated region
    $region18: #{tpu_custom_call.1} parent=1 // pred_check
      _
    $region19: #{tpu_custom_call.1} parent=1 // pred_check_branch
      %153 = sbr.rel (0) target = $region21
    $region20: #{tpu_custom_call.1} parent=1 // pred_region
      %155 = vsyncadd [#allocation4], 0
      %s157 = sshll.u32 [#allocation3], 4
      %s158 = int_to_ptr.vmem [resolvable:$true] %s157
      %s159 = sshll.u32 %s2, 4
      %s160 = int_to_ptr.hbm [resolvable:$true] %s159
      %162 = dma.vmem_to_hbm [thread:$0]  %s158, 128, %s160, [#allocation4]
    $region21: #{tpu_custom_call.1} parent=1 // pred_fallthru
      _
    // Predicated region
    $region22: #{tpu_custom_call.1} parent=1 // pred_check
      _
    $region23: #{tpu_custom_call.1} parent=1 // pred_check_branch
      %164 = sbr.rel (0) target = $region25
    $region24: #{tpu_custom_call.1} parent=1 // pred_region
      %166 = dma.done [#allocation4], 128
    $region25: #{tpu_custom_call.1} parent=1 // pred_fallthru
      _
    %167 = vsyncpa [#allocation4], 1

</llo_original>
